<compile_context>
chip_gen: v5e
topology: v5e:2x2
jax: 0.10.0
libtpu: 0.0.40
codegen_flags: <defaults>
</compile_context>

<pallas_src>
import jax
import jax.numpy as jnp
from jax.experimental import pallas as pl
from jax.experimental.pallas import tpu as pltpu


# ----------------------------- kernels --------------------------------------

def _se_kernel_hw_lanes(x_ref, w1t_ref, w2t_ref, o_ref):
    """SE forward on a (Bn, C, HW) block — HW on the lane axis."""
    x = x_ref[...]                                                 # native dtype
    hw = x_ref.shape[-1]
    # AdaptiveAvgPool2d(1): per-(n, c) mean, accumulated in f32.
    pooled = jnp.sum(x, axis=-1, dtype=jnp.float32) * jnp.float32(1.0 / hw)
    # Conv2d(C -> mid, k=1, bias=False) + ReLU.
    h = jnp.maximum(
        jnp.dot(pooled, w1t_ref[...], preferred_element_type=jnp.float32), 0.0)
    # Conv2d(mid -> C, k=1, bias=False) + Sigmoid (exp/recip on the EUP).
    s = jax.nn.sigmoid(
        jnp.dot(h, w2t_ref[...], preferred_element_type=jnp.float32))
    # Rescale in the input's native dtype: cast the tiny scale down instead of
    # casting the whole tile up.
    o_ref[...] = x * s.astype(x.dtype)[:, :, None]


def _se_kernel_c_lanes(x_ref, w1t_ref, w2t_ref, o_ref):
    """SE forward on a (Bn, HW, C) block — C on the lane axis."""
    x = x_ref[...]
    hw = x_ref.shape[-2]
    pooled = jnp.sum(x, axis=-2, dtype=jnp.float32) * jnp.float32(1.0 / hw)
    h = jnp.maximum(
        jnp.dot(pooled, w1t_ref[...], preferred_element_type=jnp.float32), 0.0)
    s = jax.nn.sigmoid(
        jnp.dot(h, w2t_ref[...], preferred_element_type=jnp.float32))
    o_ref[...] = x * s.astype(x.dtype)[:, None, :]


# ------------------------ block-size selection -------------------------------

def _chip_budgets():
    """Return (block_cap_bytes, min_block_bytes, multi_tc)."""
    vmem_cap = None
    try:
        vmem_cap = int(pltpu.get_tpu_info().vmem_capacity_bytes)
    except Exception:
        vmem_cap = None
    if vmem_cap is None:
        try:
            kind = jax.devices()[0].device_kind.lower()
            vmem_cap = (64 << 20) if "v7" in kind else (128 << 20)
        except Exception:
            vmem_cap = 64 << 20          # conservative default (v7x per-TC)
    if vmem_cap <= (96 << 20):
        # v7x-class: 64 MiB per TC, 2 TCs/chip.  Keep 4*block + weights + headroom
        # well inside the per-TC budget.
        return 8 << 20, 4 << 20, True
    # v5e/v6e-class: 128 MiB VMEM, 1 TC/chip -> bigger blocks are free.
    return 16 << 20, 4 << 20, False


def _pick_batch_block(N, per_elem_bytes, block_cap, min_block, multi_tc):
    """Choose how many batch elements each grid step processes."""
    # Let the VMEM block cap be the binding limit (several MiB per step),
    # so the ~0.35us per-step overhead is amortized.
    bn = int(min(N, max(1, block_cap // per_elem_bytes)))
    # Multi-TC (v7x) only: prefer >= 2 grid steps so the "parallel" batch axis
    # can shard across cores, but never below the per-step byte target.
    if multi_tc and N >= 2 and bn >= N:
        bn_half = -(-N // 2)             # ceil(N/2) -> 2 grid steps
        if bn_half * per_elem_bytes >= min_block:
            bn = bn_half
    return max(1, bn)


# ------------------------------ wrapper --------------------------------------

def senet_forward(x_nchw, w1, w2, *, batch_block=None, donate_input=False):
    """SE forward. x_nchw: (N, C, H, W); w1: (mid, C); w2: (C, mid)."""
    N, C, H, W = x_nchw.shape
    HW = H * W
    mid = w1.shape[0]
    itemsize = jnp.dtype(x_nchw.dtype).itemsize
    per_elem = C * HW * itemsize

    w1t = w1.T                           # (C, mid)
    w2t = w2.T                           # (mid, C)

    block_cap, min_block, multi_tc = _chip_budgets()
    if batch_block is None:
        bn = _pick_batch_block(N, per_elem, block_cap, min_block, multi_tc)
    else:
        bn = int(batch_block)
    bn = int(min(max(1, bn), N))
    grid = (pl.cdiv(N, bn),)             # tail block (if any) is masked by Pallas

    # Pick the layout that keeps the lane axis a multiple of 128.
    c_lanes = (HW % 128 != 0) and (C % 128 == 0)
    if c_lanes:
        # Wrapper-side transpose costs one extra HBM pass each way but avoids
        # masked partial stores on every tile inside the kernel.
        x_in = x_nchw.reshape(N, C, HW).transpose(0, 2, 1)   # (N, HW, C)
        kernel = _se_kernel_c_lanes
        block = (bn, HW, C)
    else:
        x_in = x_nchw.reshape(N, C, HW)                       # (N, C, HW)
        kernel = _se_kernel_hw_lanes
        block = (bn, C, HW)

    # Explicit VMEM budget: double-buffered in + double-buffered out + weights.
    block_bytes = bn * per_elem
    weight_bytes = 2 * C * mid * jnp.dtype(w1.dtype).itemsize
    vmem_limit = int(max(4 * block_bytes + 2 * weight_bytes + (2 << 20), 16 << 20))

    out = pl.pallas_call(
        kernel,
        out_shape=jax.ShapeDtypeStruct(x_in.shape, x_in.dtype),
        grid_spec=pltpu.PrefetchScalarGridSpec(
            num_scalar_prefetch=0,
            grid=grid,
            in_specs=[
                pl.BlockSpec(block, lambda n: (n, 0, 0)),
                pl.BlockSpec((C, mid), lambda n: (0, 0)),
                pl.BlockSpec((mid, C), lambda n: (0, 0)),
            ],
            out_specs=pl.BlockSpec(block, lambda n: (n, 0, 0)),
        ),
        compiler_params=pltpu.CompilerParams(
            dimension_semantics=("parallel",),
            vmem_limit_bytes=vmem_limit,
        ),
        # Optional: alias x -> out to drop the separate HBM output allocation
        # when the caller no longer needs x (capacity win, traffic unchanged).
        input_output_aliases=({0: 0} if donate_input else {}),
    )(x_in, w1t, w2t)

    if c_lanes:
        return out.transpose(0, 2, 1).reshape(N, C, H, W)
    return out.reshape(N, C, H, W)


def senet_reference(x_nchw, w1, w2):
    """Plain-JAX reference matching the PyTorch module semantics."""
    avg = jnp.mean(x_nchw, axis=(2, 3))                         # (N, C)
    h = jnp.maximum(jnp.einsum("mc,nc->nm", w1, avg), 0.0)      # (N, mid)
    s = jax.nn.sigmoid(jnp.einsum("cm,nm->nc", w2, h))          # (N, C)
    return x_nchw * s[:, :, None, None]


if __name__ == "__main__":
    key = jax.random.PRNGKey(0)
    reduction = 4

    # Case 1: HW-on-lanes layout (HW % 128 == 0); SENet(in_channels=8, reduction=4).
    N, C, H, W = 2, 8, 16, 16
    mid = C // reduction
    kx, k1, k2, k3 = jax.random.split(key, 4)
    x = jax.random.normal(kx, (N, C, H, W), dtype=jnp.float32)
    w1 = 0.1 * jax.random.normal(k1, (mid, C), dtype=jnp.float32)    # squeeze
    w2 = 0.1 * jax.random.normal(k2, (C, mid), dtype=jnp.float32)    # excite
    out = jax.block_until_ready(senet_forward(x, w1, w2))
    ref = senet_reference(x, w1, w2)
    assert out.shape == (N, C, H, W)
    assert jnp.allclose(out, ref, atol=1e-5, rtol=1e-5), "mismatch vs reference (case 1)"

    # Case 2: C-on-lanes layout (7x7 map, C % 128 == 0) plus a masked tail block
    # (N=3 with batch_block=2 -> grid = cdiv(3, 2) = 2 steps).
    N2, C2, H2, W2 = 3, 128, 7, 7
    mid2 = C2 // reduction
    kx2, k12, k22 = jax.random.split(k3, 3)
    x2 = jax.random.normal(kx2, (N2, C2, H2, W2), dtype=jnp.float32)
    w12 = 0.1 * jax.random.normal(k12, (mid2, C2), dtype=jnp.float32)
    w22 = 0.1 * jax.random.normal(k22, (C2, mid2), dtype=jnp.float32)
    out2 = jax.block_until_ready(senet_forward(x2, w12, w22, batch_block=2))
    ref2 = senet_reference(x2, w12, w22)
    assert out2.shape == (N2, C2, H2, W2)
    assert jnp.allclose(out2, ref2, atol=1e-5, rtol=1e-5), "mismatch vs reference (case 2)"

    print("KERNEL_OK")
</pallas_src>

<mosaic_0001>
module attributes {stable_mosaic.version = 11 : i64} {
  func.func @_se_kernel_hw_lanes(%arg0: i32, %arg1: memref<2x8x256xf32, #tpu.memory_space<vmem>>, %arg2: memref<8x2xf32, #tpu.memory_space<vmem>>, %arg3: memref<2x8xf32, #tpu.memory_space<vmem>>, %arg4: memref<2x8x256xf32, #tpu.memory_space<vmem>>) attributes {dimension_semantics = [#tpu.dimension_semantics<parallel>], iteration_bounds = array<i64: 1>, scalar_prefetch = 0 : i64, scratch_operands = 0 : i64, tpu.core_type = #tpu.core_type<tc>, window_params = [{transform_indices = @transform_0, window_bounds = array<i64: 2, 8, 256>}, {pipeline_mode = #tpu.pipeline_mode<synchronous>, transform_indices = @transform_1, window_bounds = array<i64: 8, 2>}, {pipeline_mode = #tpu.pipeline_mode<synchronous>, transform_indices = @transform_2, window_bounds = array<i64: 2, 8>}, {transform_indices = @transform_3, window_bounds = array<i64: 2, 8, 256>}]} {
    %c0 = arith.constant 0 : index
    %c0_0 = arith.constant 0 : index
    %c0_1 = arith.constant 0 : index
    %0 = vector.load %arg1[%c0, %c0_0, %c0_1] : memref<2x8x256xf32, #tpu.memory_space<vmem>>, vector<2x8x256xf32>
    %cst = arith.constant dense<0.000000e+00> : vector<2x8xf32>
    %1 = vector.multi_reduction <add>, %0, %cst [2] : vector<2x8x256xf32> to vector<2x8xf32>
    %cst_2 = arith.constant 3.906250e-03 : f32
    %2 = vector.broadcast %cst_2 : f32 to vector<2x8xf32>
    %3 = arith.mulf %1, %2 : vector<2x8xf32>
    %c0_3 = arith.constant 0 : index
    %c0_4 = arith.constant 0 : index
    %4 = vector.load %arg2[%c0_3, %c0_4] : memref<8x2xf32, #tpu.memory_space<vmem>>, vector<8x2xf32>
    %cst_5 = arith.constant dense<0.000000e+00> : vector<2x2xf32>
    %5 = tpu.matmul %3, %4, %cst_5 {dimension_numbers = #tpu.dot_dimension_numbers<[1], [0], [0], [1], [0, 0, 1, 1], [], []>} : vector<2x8xf32>, vector<8x2xf32>, vector<2x2xf32> -> vector<2x2xf32>
    %cst_6 = arith.constant 0.000000e+00 : f32
    %6 = vector.broadcast %cst_6 : f32 to vector<2x2xf32>
    %7 = arith.maximumf %5, %6 : vector<2x2xf32>
    %c0_7 = arith.constant 0 : index
    %c0_8 = arith.constant 0 : index
    %8 = vector.load %arg3[%c0_7, %c0_8] : memref<2x8xf32, #tpu.memory_space<vmem>>, vector<2x8xf32>
    %cst_9 = arith.constant dense<0.000000e+00> : vector<2x8xf32>
    %9 = tpu.matmul %7, %8, %cst_9 {dimension_numbers = #tpu.dot_dimension_numbers<[1], [0], [0], [1], [0, 0, 1, 1], [], []>} : vector<2x2xf32>, vector<2x8xf32>, vector<2x8xf32> -> vector<2x8xf32>
    %10 = arith.negf %9 : vector<2x8xf32>
    %11 = math.exp %10 : vector<2x8xf32>
    %cst_10 = arith.constant 1.000000e+00 : f32
    %12 = vector.broadcast %cst_10 : f32 to vector<2x8xf32>
    %13 = arith.addf %12, %11 : vector<2x8xf32>
    %14 = arith.divf %12, %13 : vector<2x8xf32>
    %15 = vector.shape_cast %14 : vector<2x8xf32> to vector<2x8x1xf32>
    %16 = vector.broadcast %15 : vector<2x8x1xf32> to vector<2x8x256xf32>
    %17 = arith.mulf %0, %16 : vector<2x8x256xf32>
    %c0_11 = arith.constant 0 : index
    %c0_12 = arith.constant 0 : index
    %c0_13 = arith.constant 0 : index
    %18 = vector.load %arg4[%c0_11, %c0_12, %c0_13] : memref<2x8x256xf32, #tpu.memory_space<vmem>>, vector<2x8x256xf32>
    tpu.vector_store %arg4[%c0_11, %c0_12, %c0_13], %17 {strides = array<i32>} : memref<2x8x256xf32, #tpu.memory_space<vmem>>, vector<2x8x256xf32>,
    return
  }
  func.func @transform_0(%arg0: i32) -> (i32, i32, i32) {
    %c0_i32 = arith.constant 0 : i32
    %c0_i32_0 = arith.constant 0 : i32
    %c0_i32_1 = arith.constant 0 : i32
    return %arg0, %c0_i32, %c0_i32_0 : i32, i32, i32
  }
  func.func @transform_1(%arg0: i32) -> (i32, i32) {
    %c0_i32 = arith.constant 0 : i32
    %c0_i32_0 = arith.constant 0 : i32
    %c0_i32_1 = arith.constant 0 : i32
    return %c0_i32, %c0_i32_0 : i32, i32
  }
  func.func @transform_2(%arg0: i32) -> (i32, i32) {
    %c0_i32 = arith.constant 0 : i32
    %c0_i32_0 = arith.constant 0 : i32
    %c0_i32_1 = arith.constant 0 : i32
    return %c0_i32, %c0_i32_0 : i32, i32
  }
  func.func @transform_3(%arg0: i32) -> (i32, i32, i32) {
    %c0_i32 = arith.constant 0 : i32
    %c0_i32_0 = arith.constant 0 : i32
    %c0_i32_1 = arith.constant 0 : i32
    return %arg0, %c0_i32, %c0_i32_0 : i32, i32, i32
  }
}

</mosaic_0001>

<llo_original>
// kernel: tpu_custom_call.1
$region0: #{tpu_custom_call.1}
  #allocation0 [shape = 'u32[]', space=smem, size = 0x4, offset = 0x4, fixed_abs, tag = 'smem constant byte address 0x4 - core index']
  #allocation1 [shape = 'u32[72,128]{1,0:T(1,128)}', space=vmem, size = 0x9000, scoped, tag = 'internal scratch']
  %s0 = inlined_call_operand.hbm [shape: f32[2,8,256], index: 0, kind: input, shape index: {}]
  %s1 = inlined_call_operand.vmem [shape: f32[8,2], index: 1, kind: input, shape index: {}]
  %s2 = inlined_call_operand.vmem [shape: f32[2,8], index: 2, kind: input, shape index: {}]
  %s3 = inlined_call_operand.hbm [shape: f32[2,8,256], index: 3, kind: output, shape index: {}]
  %s4 = sld [smem:[#allocation0]]
  $region26: #{tpu_custom_call.1} parent=0
    _
  %s6 = ssub.s32 1, %s4
  %s7 = scalar_select 0, %s6, %s4
  $region1: #{tpu_custom_call.1} parent=0
    #allocation2 [shape = 'u8[16384]{0}', space=vmem, size = 0x4000, scoped, tag = 'input window, operand 0, single buffered']
    #allocation3 [shape = 's32[1]{0}', space=sflag, size = 0x4, scoped, tag = 'scoped memory for tpu_custom_call.1']
    #allocation4 [shape = 's32[1]{0}', space=sflag, size = 0x4, scoped, tag = 'scoped memory for tpu_custom_call.1']
    #allocation5 [shape = 'u8[16384]{0}', space=vmem, size = 0x4000, scoped, tag = 'output window, operand 0, single buffered']
    %8 = vsyncpa [#allocation3], 0
    %9 = vsyncpa [#allocation4], 0
    // Predicated region
    $region2: #{tpu_custom_call.1} parent=1 // pred_check
      _
    $region3: #{tpu_custom_call.1} parent=1 // pred_check_branch
      %11 = sbr.rel (0) target = $region5
    $region4: #{tpu_custom_call.1} parent=1 // pred_region
      %13 = vsyncadd [#allocation3], 0
      %s14 = sshll.u32 %s0, 4
      %s15 = int_to_ptr.hbm [resolvable:$true] %s14
      %s16 = sshll.u32 [#allocation2], 4
      %s17 = int_to_ptr.vmem [resolvable:$true] %s16
      %22 = dma.hbm_to_vmem [thread:$0]  %s15, 512, %s17, [#allocation3], 256, 256, 16
    $region5: #{tpu_custom_call.1} parent=1 // pred_fallthru
      _
    // Predicated region
    $region6: #{tpu_custom_call.1} parent=1 // pred_check
      _
    $region7: #{tpu_custom_call.1} parent=1 // pred_check_branch
      %24 = sbr.rel (0) target = $region9
    $region8: #{tpu_custom_call.1} parent=1 // pred_region
      _
    $region9: #{tpu_custom_call.1} parent=1 // pred_fallthru
      _
    // Predicated region
    $region10: #{tpu_custom_call.1} parent=1 // pred_check
      _
    $region11: #{tpu_custom_call.1} parent=1 // pred_check_branch
      %26 = sbr.rel (0) target = $region13
    $region12: #{tpu_custom_call.1} parent=1 // pred_region
      _
    $region13: #{tpu_custom_call.1} parent=1 // pred_fallthru
      _
    // Predicated region
    $region14: #{tpu_custom_call.1} parent=1 // pred_check
      _
    $region15: #{tpu_custom_call.1} parent=1 // pred_check_branch
      %28 = sbr.rel (0) target = $region17
    $region16: #{tpu_custom_call.1} parent=1 // pred_region
      %30 = dma.done [#allocation3], 512
    $region17: #{tpu_custom_call.1} parent=1 // pred_fallthru
      _
    %v31 = vld [vmem:[#allocation2] sm:$0xff]
    %v32 = vld [vmem:[#allocation2 + $0x8] sm:$0xff]
    %v33 = vld [vmem:[#allocation2 + $0x10] sm:$0xff]
    %v34 = vld [vmem:[#allocation2 + $0x18] sm:$0xff]
    %v35 = vadd.f32 %v31, %v32
    %36 = vadd.xlane.f32.xlu0 %v35
    %v37 = vpop.xlane.xlu0 %36
    %v38 = vadd.f32 %v33, %v34
    %39 = vadd.xlane.f32.xlu0 %v38
    %v40 = vpop.xlane.xlu0 %39
    %v41 = vmul.f32 %v37, 0.00390625
    %v42 = vmul.f32 %v40, 0.00390625
    %v43 = vld [vmem:[%s1] sm:$0xff]
    %v46 = vlaneseq
    %v47 = vand.u32 %v46, 127
    %v48 = vperm.slane %v41, %v47
    %v49 = vperm.slane %v42, %v47
    %vm50 = vcmask 1041409
    %v51 = vsel %vm50, %v49, %v48
    %vm52 = vcmask 64512
    %v53 = vsel %vm52, %v51, 0
    %55 = vmatpush.msra.mxu0 0.0
    %56 = vmatpush.msra.mxu0 0.0
    %57 = vmatpush.msra.mxu0 0.0
    %58 = vmatpush.msra.mxu0 0.0
    %59 = vmatpush.msra.mxu0 0.0
    %60 = vmatpush.msra.mxu0 0.0
    %61 = vmatpush.msra.mxu0 0.0
    %62 = vmatpush.msra.mxu0 0.0
    %63 = vmatpush.msra.mxu0 0.0
    %64 = vmatpush.msra.mxu0 0.0
    %65 = vmatpush.msra.mxu0 0.0
    %66 = vmatpush.msra.mxu0 0.0
    %67 = vmatpush.msra.mxu0 0.0
    %68 = vmatpush.msra.mxu0 0.0
    %69 = vmatpush.msra.mxu0 0.0
    %70 = vmatpush.msra.mxu0 %v43
    %71 = vmatmul.f32.gmra.mxu0 %v53
    %v72 = vpop.f32.mrf.mxu0
    %v73 = vadd.f32 0.0, %v72
    %74 = vdwg.mxu0
    %v75 = vmax.f32 %v73, 0.0
    %v76 = vld [vmem:[%s2] sm:$0x3]
    %vm77 = vcmask 15360
    %v79 = vsel %vm77, %v75, 0
    %vm81 = vcmask 1041408
    %v83 = vsel %vm81, %v76, 0
    %85 = vmatpush.msra.mxu0 0.0
    %86 = vmatpush.msra.mxu0 0.0
    %87 = vmatpush.msra.mxu0 0.0
    %88 = vmatpush.msra.mxu0 0.0
    %89 = vmatpush.msra.mxu0 0.0
    %90 = vmatpush.msra.mxu0 0.0
    %91 = vmatpush.msra.mxu0 0.0
    %92 = vmatpush.msra.mxu0 0.0
    %93 = vmatpush.msra.mxu0 0.0
    %94 = vmatpush.msra.mxu0 0.0
    %95 = vmatpush.msra.mxu0 0.0
    %96 = vmatpush.msra.mxu0 0.0
    %97 = vmatpush.msra.mxu0 0.0
    %98 = vmatpush.msra.mxu0 0.0
    %99 = vmatpush.msra.mxu0 0.0
    %100 = vmatpush.msra.mxu0 %v83
    %101 = vmatmul.f32.gmra.mxu0 %v79
    %v102 = vpop.f32.mrf.mxu0
    %v103 = vadd.f32 0.0, %v102
    %104 = vdwg.mxu0
    %v105 = vxor.u32 %v103, 2147483648
    %v106 = vmul.f32 %v105, 1.442695
    %v107 = vpow.pop %v106
    %v108 = vadd.f32 %v107, 1.0
    %v109 = vrcp.pop %v108
    %v110 = vmul.f32 %v108, %v109
    %v111 = vsub.f32 1.0, %v110
    %v112 = vmul.f32 %v109, %v111
    %v113 = vadd.f32 %v109, %v112
    %vm114 = vweird.f32 %v108
    %vm115 = vweird.f32 %v109
    %vm116 = vmor %vm114, %vm115
    %v117 = vsel %vm116, %v109, %v113
    %v118 = vand.u32 2147483647, %v108
    %vm119 = vcmp.eq.f32.partialorder %v118, 8.507059e+37
    %v120 = vand.u32 %v108, 2147483648
    %v121 = vor.u32 1.1754944e-38, %v120
    %v122 = vsel %vm119, %v121, %v117
    %v123 = vmul.f32 1.0, %v122
    %v124 = vperm.slane %v123, 0
    %v125 = vlaneseq
    %v126 = vshrl.u32 %v125, 7
    %128 = vset.pattern.permute.xlu0 %v126
    %129 = vperm.xlu0 %128, %v124
    %v130 = vpop.permute.xlu0 %129
    %v131 = vperm.slane %v123, 1
    %v132 = vlaneseq
    %v133 = vshrl.u32 %v132, 7
    %135 = vset.pattern.permute.xlu0 %v133
    %136 = vperm.xlu0 %135, %v131
    %v137 = vpop.permute.xlu0 %136
    %v138 = vmul.f32 %v31, %v130
    %v139 = vmul.f32 %v32, %v130
    %v140 = vmul.f32 %v33, %v137
    %v141 = vmul.f32 %v34, %v137
    %142 = vst [vmem:[#allocation5] sm:$0xff] %v138
    %143 = vst [vmem:[#allocation5 + $0x8] sm:$0xff] %v139
    %144 = vst [vmem:[#allocation5 + $0x10] sm:$0xff] %v140
    %145 = vst [vmem:[#allocation5 + $0x18] sm:$0xff] %v141
    // Predicated region
    $region18: #{tpu_custom_call.1} parent=1 // pred_check
      _
    $region19: #{tpu_custom_call.1} parent=1 // pred_check_branch
      %147 = sbr.rel (0) target = $region21
    $region20: #{tpu_custom_call.1} parent=1 // pred_region
      %149 = vsyncadd [#allocation4], 0
      %s150 = sshll.u32 [#allocation5], 4
      %s151 = int_to_ptr.vmem [resolvable:$true] %s150
      %s152 = sshll.u32 %s3, 4
      %s153 = int_to_ptr.hbm [resolvable:$true] %s152
      %158 = dma.vmem_to_hbm [thread:$0]  %s151, 512, %s153, [#allocation4], 256, 256, 16
    $region21: #{tpu_custom_call.1} parent=1 // pred_fallthru
      _
    // Predicated region
    $region22: #{tpu_custom_call.1} parent=1 // pred_check
      _
    $region23: #{tpu_custom_call.1} parent=1 // pred_check_branch
      %160 = sbr.rel (0) target = $region25
    $region24: #{tpu_custom_call.1} parent=1 // pred_region
      %162 = dma.done [#allocation4], 512
    $region25: #{tpu_custom_call.1} parent=1 // pred_fallthru
      _
    %163 = vsyncpa [#allocation3], 1
    %164 = vsyncpa [#allocation4], 1

</llo_original>
